<compile_context>
chip_gen: v7x
topology: tpu7x:2x2x1
jax: 0.10.0
libtpu: 0.0.40
codegen_flags: <defaults>
</compile_context>

<pallas_src>
import jax
import jax.numpy as jnp
from jax.experimental import pallas as pl
from jax.experimental.pallas import tpu as pltpu


def _round_up(x, m):
    return ((x + m - 1) // m) * m


def _mxu_width():
    """Native MXU contraction width: 256 on v6e/v7x, 128 on v2-v5."""
    try:
        kind = jax.devices()[0].device_kind.lower()
    except Exception:
        return 256
    if ("v6" in kind) or ("v7" in kind) or ("7x" in kind):
        return 256
    return 128


def _pack_for(F, lane_target):
    """How many batch rows to pack per 128*-lane row, and resulting lane width."""
    if F < lane_target and lane_target % F == 0:
        pack = lane_target // F
        return pack, F * pack, 0
    FL = _round_up(F, 128)
    return 1, FL, FL - F


# ---------------------------------------------------------------------------
# Kernels
# ---------------------------------------------------------------------------
def _scale_kernel(scale_ref, x_ref, o_ref):
    """o = x * scale  (scale row broadcasts over the sublane/batch axis)."""
    o_ref[...] = (x_ref[...].astype(jnp.float32) * scale_ref[...]).astype(o_ref.dtype)


def _enhance_kernel(w_ref, b_ref, x_ref, o_ref):
    """o = x @ W_fold + b_fold  (scale, mix and bias pre-folded into W/b).

    Single bf16 MXU matmul with f32 accumulation; output stores are full-lane.
    """
    x = x_ref[...].astype(jnp.bfloat16)
    y = jnp.dot(x, w_ref[...], preferred_element_type=jnp.float32) + b_ref[...]
    o_ref[...] = y.astype(o_ref.dtype)


# ---------------------------------------------------------------------------
# Wrapper
# ---------------------------------------------------------------------------
def layer_feedback_adapter(features, guidance, *, dimension_mask, enh_weight,
                           enh_bias, block_rows=None, force_pallas=False):
    """JAX/Pallas equivalent of LayerFeedbackAdapter.forward.

    features: [batch, feature_dim]
    guidance: dict of Python scalars (static), mirroring the torch usage.
    """
    B, F = features.shape
    out_dtype = features.dtype

    weight_adj = float(guidance.get("weight_adjustment", 1.0))

    # Fold weight_adjustment and dimension selection into one per-feature scale.
    scale = jnp.full((F,), weight_adj, dtype=jnp.float32)
    selection_active = False
    dim_info = guidance.get("dimension_selection", {})
    if "selection_ratio" in dim_info:
        sr = float(dim_info["selection_ratio"])
        if sr < 1.0:
            # TODO(synk): quantile/threshold over the [F] dimension_mask is a tiny
            # sort-based op with no clean Pallas equivalent; computed in plain JAX.
            m = jax.nn.sigmoid(dimension_mask.astype(jnp.float32))
            thr = jnp.quantile(m, 1.0 - sr)
            scale = scale * (m >= thr).astype(jnp.float32)
            selection_active = True

    ef = float(guidance.get("enhancement_factor", 1.0))
    do_enhance = ef != 1.0
    if do_enhance:
        mix = min(abs(ef - 1.0), 0.5)
        alpha, beta = (1.0 - mix, mix) if ef > 1.0 else (1.0 + mix, -mix)

    if (weight_adj == 1.0) and (not selection_active) and (not do_enhance):
        return features  # pure identity, no kernel dispatch

    # Small-problem fallback: fixed pallas_call dispatch dominates at tiny sizes;
    # XLA's fused elementwise / small dot is faster and can fuse with neighbours.
    if not force_pallas and B * F < (1 << 17):
        adjusted = features.astype(jnp.float32) * scale[None, :]
        if do_enhance:
            enhanced = (adjusted @ enh_weight.astype(jnp.float32).T
                        + enh_bias.astype(jnp.float32))
            adjusted = alpha * adjusted + beta * enhanced
        return adjusted.astype(out_dtype)

    # ---- lane-dense packing: put `pack` batch rows side-by-side in the lanes ----
    # Matmul path is pinned to the MXU width (256 on v6e/v7x, 128 on v5e); the
    # elementwise path is free to use a wider slab for unmasked vld/vst.
    lane_target = _mxu_width() if do_enhance else 512
    pack, FL, lane_pad = _pack_for(F, lane_target)

    pad_b = (-B) % pack
    x = features
    if pad_b:
        x = jnp.pad(x, ((0, pad_b), (0, 0)))
    R = (B + pad_b) // pack
    x = x.reshape(R, F * pack)                 # free reshape for row-major input
    if lane_pad:
        x = jnp.pad(x, ((0, 0), (0, lane_pad)))

    scale_row = jnp.tile(scale, pack)
    if lane_pad:
        scale_row = jnp.pad(scale_row, (0, lane_pad))
    scale_row = scale_row.reshape(1, FL)

    # ---- row tiling over the packed batch axis (auto double-buffered) ----
    if block_rows is None:
        block_rows = max(8, (2048 * 128) // FL)     # ~1 MiB f32 tiles
    tm = _round_up(block_rows, 8)
    # Keep >= 4 grid steps when the batch allows it (v7x megacore sharding +
    # pipeline overlap); a full-array single block is used for tiny batches.
    tm = min(tm, max(8, _round_up(pl.cdiv(R, 4), 8)))
    if R <= tm:
        tm = R                                       # block == full dim (always legal)
    num_steps = pl.cdiv(R, tm)                       # Pallas masks the partial tail block

    cparams = pltpu.CompilerParams(dimension_semantics=("parallel",))
    x_spec = pl.BlockSpec((tm, FL), lambda i: (i, 0))
    row_spec = pl.BlockSpec((1, FL), lambda i: (0, 0))   # grid-invariant, fetched once
    out_spec = pl.BlockSpec((tm, FL), lambda i: (i, 0))

    if do_enhance:
        # Block-diagonal weight on the packed lane layout (nn.Linear: y = x @ W.T + b).
        w_t = enh_weight.astype(jnp.float32).T
        w_bd = jnp.kron(jnp.eye(pack, dtype=jnp.float32), w_t)
        bias_row = jnp.tile(enh_bias.astype(jnp.float32), pack)
        if lane_pad:
            w_bd = jnp.pad(w_bd, ((0, lane_pad), (0, lane_pad)))
            bias_row = jnp.pad(bias_row, (0, lane_pad))
        # Fold scale + mix + bias:
        #   alpha*(x*s) + beta*((x*s) @ W + b) = x @ (diag(s) @ (alpha*I + beta*W)) + beta*b
        # Padded lanes have s == 0, so padded rows/cols of W_fold and b_fold are
        # exactly zero and the final slice discards only zeros.
        w_fold = scale_row.reshape(FL, 1) * (
            alpha * jnp.eye(FL, dtype=jnp.float32) + beta * w_bd)
        bias_fold = (beta * bias_row).reshape(1, FL)

        out_packed = pl.pallas_call(
            _enhance_kernel,
            out_shape=jax.ShapeDtypeStruct((R, FL), out_dtype),
            grid=(num_steps,),
            in_specs=[pl.BlockSpec((FL, FL), lambda i: (0, 0)),   # weight (resident)
                      row_spec,                                    # bias   (resident)
                      x_spec],
            out_specs=out_spec,
            compiler_params=cparams,
        )(w_fold.astype(jnp.bfloat16), bias_fold, x)
    else:
        out_packed = pl.pallas_call(
            _scale_kernel,
            out_shape=jax.ShapeDtypeStruct((R, FL), out_dtype),
            grid=(num_steps,),
            in_specs=[row_spec, x_spec],
            out_specs=out_spec,
            compiler_params=cparams,
        )(scale_row, x)

    # ---- unpack back to [B, F] (no-op slices when B and F were already aligned) ----
    if lane_pad:
        out_packed = out_packed[:, : F * pack]
    out = out_packed.reshape(R * pack, F)
    if R * pack != B:
        out = out[:B]
    return out


class LayerFeedbackAdapterJAX:
    """JAX mirror of the PyTorch LayerFeedbackAdapter (inference only)."""

    def __init__(self, feature_dim: int, layer_type: str):
        self.feature_dim = feature_dim
        self.layer_type = layer_type
        # torch init parity: weight_factor (unused in forward), ones mask,
        # identity enhancement weight, zero bias.
        self.weight_factor = jnp.ones((1,), dtype=jnp.float32)
        self.dimension_mask = jnp.ones((feature_dim,), dtype=jnp.float32)
        self.enh_weight = jnp.eye(feature_dim, dtype=jnp.float32)
        self.enh_bias = jnp.zeros((feature_dim,), dtype=jnp.float32)

    def __call__(self, features, guidance, force_pallas=False):
        return layer_feedback_adapter(
            features, guidance,
            dimension_mask=self.dimension_mask,
            enh_weight=self.enh_weight,
            enh_bias=self.enh_bias,
            force_pallas=force_pallas,
        )


# ---------------------------------------------------------------------------
# Pure-JAX reference (mirrors the torch forward line by line, f32 HIGHEST precision)
# ---------------------------------------------------------------------------
def reference_forward(features, guidance, adapter):
    adjusted = features
    weight_adj = guidance.get("weight_adjustment", 1.0)
    if weight_adj != 1.0:
        adjusted = adjusted * weight_adj
    dim_info = guidance.get("dimension_selection", {})
    if "selection_ratio" in dim_info:
        sr = dim_info["selection_ratio"]
        if sr < 1.0:
            m = jax.nn.sigmoid(adapter.dimension_mask)
            thr = jnp.quantile(m, 1.0 - sr)
            binary_mask = (m >= thr).astype(features.dtype)
            adjusted = adjusted * binary_mask[None, :]
    ef = guidance.get("enhancement_factor", 1.0)
    if ef != 1.0:
        enhanced = jnp.matmul(adjusted, adapter.enh_weight.T,
                              precision=jax.lax.Precision.HIGHEST) + adapter.enh_bias
        mix = min(abs(ef - 1.0), 0.5)
        if ef > 1.0:
            adjusted = (1 - mix) * adjusted + mix * enhanced
        else:
            adjusted = (1 + mix) * adjusted - mix * enhanced
    return adjusted


if __name__ == "__main__":
    key = jax.random.PRNGKey(0)
    k_feat, k_mask, k_w, k_b = jax.random.split(key, 4)

    batch, feature_dim = 16, 32
    features = jax.random.normal(k_feat, (batch, feature_dim), dtype=jnp.float32)

    adapter = LayerFeedbackAdapterJAX(feature_dim=feature_dim, layer_type="conv")
    # Perturb away from the trivial identity init so every branch is exercised.
    adapter.dimension_mask = jax.random.normal(k_mask, (feature_dim,), dtype=jnp.float32)
    adapter.enh_weight = (jnp.eye(feature_dim, dtype=jnp.float32)
                          + 0.2 * jax.random.normal(k_w, (feature_dim, feature_dim),
                                                    dtype=jnp.float32))
    adapter.enh_bias = 0.1 * jax.random.normal(k_b, (feature_dim,), dtype=jnp.float32)

    # Case 1: weight adj + dimension selection + enhancement (ef > 1 -> folded bf16 MXU kernel).
    g1 = {"weight_adjustment": 1.25,
          "dimension_selection": {"selection_ratio": 0.75},
          "enhancement_factor": 1.3}                       # mix=0.3 -> alpha=0.7, beta=0.3
    out1 = jax.block_until_ready(adapter(features, g1, force_pallas=True))
    ref1 = reference_forward(features, g1, adapter)
    assert out1.shape == features.shape
    # bf16 MXU operands vs f32 HIGHEST-precision reference -> relaxed tolerance.
    assert jnp.allclose(out1, ref1, atol=5e-2, rtol=5e-2), "mismatch (enhance, ef>1)"

    # Case 2: scale + selection only (f32 elementwise kernel, tight tolerance).
    g2 = {"weight_adjustment": 0.8,
          "dimension_selection": {"selection_ratio": 0.5}}
    out2 = jax.block_until_ready(adapter(features, g2, force_pallas=True))
    ref2 = reference_forward(features, g2, adapter)
    assert jnp.allclose(out2, ref2, atol=1e-6, rtol=1e-6), "mismatch (scale path)"

    # Case 3: ef < 1 branch (alpha=1.1, beta=-0.1) with no scaling/selection.
    g3 = {"enhancement_factor": 0.9}
    out3 = jax.block_until_ready(adapter(features, g3, force_pallas=True))
    ref3 = reference_forward(features, g3, adapter)
    assert jnp.allclose(out3, ref3, atol=5e-2, rtol=5e-2), "mismatch (enhance, ef<1)"

    print("KERNEL_OK")
</pallas_src>

<mosaic_0001>
module attributes {stable_mosaic.version = 11 : i64} {
  func.func @_enhance_kernel(%arg0: i32, %arg1: memref<128x128xbf16, #tpu.memory_space<vmem>>, %arg2: memref<1x128xf32, #tpu.memory_space<vmem>>, %arg3: memref<4x128xf32, #tpu.memory_space<vmem>>, %arg4: memref<4x128xf32, #tpu.memory_space<vmem>>) attributes {dimension_semantics = [#tpu.dimension_semantics<parallel>], iteration_bounds = array<i64: 1>, scalar_prefetch = 0 : i64, scratch_operands = 0 : i64, tpu.core_type = #tpu.core_type<tc>, window_params = [{pipeline_mode = #tpu.pipeline_mode<synchronous>, transform_indices = @transform_0, window_bounds = array<i64: 128, 128>}, {pipeline_mode = #tpu.pipeline_mode<synchronous>, transform_indices = @transform_1, window_bounds = array<i64: 1, 128>}, {transform_indices = @transform_2, window_bounds = array<i64: 4, 128>}, {transform_indices = @transform_3, window_bounds = array<i64: 4, 128>}]} {
    %c0 = arith.constant 0 : index
    %c0_0 = arith.constant 0 : index
    %0 = vector.load %arg3[%c0, %c0_0] : memref<4x128xf32, #tpu.memory_space<vmem>>, vector<4x128xf32>
    %1 = arith.truncf %0 : vector<4x128xf32> to vector<4x128xbf16>
    %c0_1 = arith.constant 0 : index
    %c0_2 = arith.constant 0 : index
    %2 = vector.load %arg1[%c0_1, %c0_2] : memref<128x128xbf16, #tpu.memory_space<vmem>>, vector<128x128xbf16>
    %cst = arith.constant dense<0.000000e+00> : vector<4x128xf32>
    %3 = tpu.matmul %1, %2, %cst {dimension_numbers = #tpu.dot_dimension_numbers<[1], [0], [0], [1], [0, 0, 1, 1], [], []>} : vector<4x128xbf16>, vector<128x128xbf16>, vector<4x128xf32> -> vector<4x128xf32>
    %c0_3 = arith.constant 0 : index
    %c0_4 = arith.constant 0 : index
    %4 = vector.load %arg2[%c0_3, %c0_4] : memref<1x128xf32, #tpu.memory_space<vmem>>, vector<1x128xf32>
    %5 = vector.broadcast %4 : vector<1x128xf32> to vector<4x128xf32>
    %6 = arith.addf %3, %5 : vector<4x128xf32>
    %c0_5 = arith.constant 0 : index
    %c0_6 = arith.constant 0 : index
    %7 = vector.load %arg4[%c0_5, %c0_6] : memref<4x128xf32, #tpu.memory_space<vmem>>, vector<4x128xf32>
    tpu.vector_store %arg4[%c0_5, %c0_6], %6 {strides = array<i32>} : memref<4x128xf32, #tpu.memory_space<vmem>>, vector<4x128xf32>,
    return
  }
  func.func @transform_0(%arg0: i32) -> (i32, i32) {
    %c0_i32 = arith.constant 0 : i32
    %c0_i32_0 = arith.constant 0 : i32
    %c0_i32_1 = arith.constant 0 : i32
    return %c0_i32, %c0_i32_0 : i32, i32
  }
  func.func @transform_1(%arg0: i32) -> (i32, i32) {
    %c0_i32 = arith.constant 0 : i32
    %c0_i32_0 = arith.constant 0 : i32
    %c0_i32_1 = arith.constant 0 : i32
    return %c0_i32, %c0_i32_0 : i32, i32
  }
  func.func @transform_2(%arg0: i32) -> (i32, i32) {
    %c0_i32 = arith.constant 0 : i32
    %c0_i32_0 = arith.constant 0 : i32
    return %arg0, %c0_i32 : i32, i32
  }
  func.func @transform_3(%arg0: i32) -> (i32, i32) {
    %c0_i32 = arith.constant 0 : i32
    %c0_i32_0 = arith.constant 0 : i32
    return %arg0, %c0_i32 : i32, i32
  }
}

</mosaic_0001>

<llo_original>
// kernel: tpu_custom_call.1
$region0: #{tpu_custom_call.1}
  #allocation0 [shape = 'u32[]', space=smem, size = 0x4, offset = 0x4, fixed_abs, tag = 'smem constant byte address 0x4 - core index']
  #allocation1 [shape = 'u32[144,128]{1,0:T(1,128)}', space=vmem, size = 0x12000, scoped, tag = 'internal scratch']
  %s0 = inlined_call_operand.hbm [shape: bf16[128,128], index: 0, kind: input, shape index: {}]
  %s1 = inlined_call_operand.vmem [shape: f32[1,128], index: 1, kind: input, shape index: {}]
  %s2 = inlined_call_operand.vmem [shape: f32[4,128], index: 2, kind: input, shape index: {}]
  %s3 = inlined_call_operand.hbm [shape: f32[4,128], index: 3, kind: output, shape index: {}]
  %s4 = sld [smem:[#allocation0]]
  $region26: #{tpu_custom_call.1} parent=0
    _
  %s6 = ssub.s32 1, %s4
  %s7 = scalar_select 0, %s6, %s4
  $region1: #{tpu_custom_call.1} parent=0
    #allocation2 [shape = 'u8[32768]{0}', space=vmem, size = 0x8000, scoped, tag = 'input window, operand 0, single buffered']
    #allocation3 [shape = 's32[1]{0}', space=sflag, size = 0x4, scoped, tag = 'scoped memory for tpu_custom_call.1']
    #allocation4 [shape = 's32[1]{0}', space=sflag, size = 0x4, scoped, tag = 'scoped memory for tpu_custom_call.1']
    #allocation5 [shape = 'u8[2048]{0}', space=vmem, size = 0x800, scoped, tag = 'output window, operand 0, single buffered']
    %8 = vsyncpa [#allocation3], 0
    %9 = vsyncpa [#allocation4], 0
    // Predicated region
    $region2: #{tpu_custom_call.1} parent=1 // pred_check
      _
    $region3: #{tpu_custom_call.1} parent=1 // pred_check_branch
      %11 = sbr.rel (0) target = $region5
    $region4: #{tpu_custom_call.1} parent=1 // pred_region
      %s13 = ssub.s32 1024, 1024
      %14 = vsyncadd [#allocation3], %s13
      %s15 = sshll.u32 [#allocation2], 4
      %s16 = int_to_ptr.vmem [resolvable:$true] %s15
      %21 = dma.hbm_to_vmem [thread:$0]  %s0, 1024, %s16, [#allocation3], 64, 64, 4
    $region5: #{tpu_custom_call.1} parent=1 // pred_fallthru
      _
    // Predicated region
    $region6: #{tpu_custom_call.1} parent=1 // pred_check
      _
    $region7: #{tpu_custom_call.1} parent=1 // pred_check_branch
      %23 = sbr.rel (0) target = $region9
    $region8: #{tpu_custom_call.1} parent=1 // pred_region
      _
    $region9: #{tpu_custom_call.1} parent=1 // pred_fallthru
      _
    // Predicated region
    $region10: #{tpu_custom_call.1} parent=1 // pred_check
      _
    $region11: #{tpu_custom_call.1} parent=1 // pred_check_branch
      %25 = sbr.rel (0) target = $region13
    $region12: #{tpu_custom_call.1} parent=1 // pred_region
      _
    $region13: #{tpu_custom_call.1} parent=1 // pred_fallthru
      _
    // Predicated region
    $region14: #{tpu_custom_call.1} parent=1 // pred_check
      _
    $region15: #{tpu_custom_call.1} parent=1 // pred_check_branch
      %27 = sbr.rel (0) target = $region17
    $region16: #{tpu_custom_call.1} parent=1 // pred_region
      %28 = dma.done [#allocation3], 1024
    $region17: #{tpu_custom_call.1} parent=1 // pred_fallthru
      _
    %v30 = vld [vmem:[%s2] sm:$0xf]
    %v31 = vpack.c.bf16 %v30, %v30
    %v32 = vld [vmem:[#allocation2] sm:$0xf]
    %v33 = vld [vmem:[#allocation2 + $0x4] sm:$0xf]
    %v34 = vld [vmem:[#allocation2 + $0x8] sm:$0xf]
    %v35 = vld [vmem:[#allocation2 + $0xc] sm:$0xf]
    %v36 = vld [vmem:[#allocation2 + $0x10] sm:$0xf]
    %v37 = vld [vmem:[#allocation2 + $0x14] sm:$0xf]
    %v38 = vld [vmem:[#allocation2 + $0x18] sm:$0xf]
    %v39 = vld [vmem:[#allocation2 + $0x1c] sm:$0xf]
    %v40 = vld [vmem:[#allocation2 + $0x20] sm:$0xf]
    %v41 = vld [vmem:[#allocation2 + $0x24] sm:$0xf]
    %v42 = vld [vmem:[#allocation2 + $0x28] sm:$0xf]
    %v43 = vld [vmem:[#allocation2 + $0x2c] sm:$0xf]
    %v44 = vld [vmem:[#allocation2 + $0x30] sm:$0xf]
    %v45 = vld [vmem:[#allocation2 + $0x34] sm:$0xf]
    %v46 = vld [vmem:[#allocation2 + $0x38] sm:$0xf]
    %v47 = vld [vmem:[#allocation2 + $0x3c] sm:$0xf]
    %v48 = vld [vmem:[%s1] sm:$0x1]
    %v50 = vlaneseq
    %v51 = vshrl.u32 %v50, 7
    %v52 = vsub.s32 0, %v51
    %v53 = vrot.slane %v48, %v52
    %v71 = vunpack.c.l.b16 %v32
    %v72 = vunpack.c.l.b16 %v33
    %v73 = vunpack.c.l.b16 %v34
    %v74 = vunpack.c.l.b16 %v35
    %v75 = vunpack.c.l.b16 %v36
    %v76 = vunpack.c.l.b16 %v37
    %v77 = vunpack.c.l.b16 %v38
    %v78 = vunpack.c.l.b16 %v39
    %v79 = vunpack.c.l.b16 %v40
    %v80 = vunpack.c.l.b16 %v41
    %v81 = vunpack.c.l.b16 %v42
    %v82 = vunpack.c.l.b16 %v43
    %v83 = vunpack.c.l.b16 %v44
    %v84 = vunpack.c.l.b16 %v45
    %v85 = vunpack.c.l.b16 %v46
    %v86 = vunpack.c.l.b16 %v47
    %v87 = vpack.c.b16 %v72, %v71
    %v88 = vpack.c.b16 %v74, %v73
    %v89 = vpack.c.b16 %v76, %v75
    %v90 = vpack.c.b16 %v78, %v77
    %v91 = vpack.c.b16 %v80, %v79
    %v92 = vpack.c.b16 %v82, %v81
    %v93 = vpack.c.b16 %v84, %v83
    %v94 = vpack.c.b16 %v86, %v85
    %103 = vmatprep.subr.bf16.mxu0 0
    %104 = vmatpush1.bf16.msra.mxu0 %v87
    %105 = vmatprep.subr.bf16.mxu0 0
    %106 = vmatpush1.bf16.msra.mxu0 %v88
    %107 = vmatprep.subr.bf16.mxu0 0
    %108 = vmatpush1.bf16.msra.mxu0 %v89
    %109 = vmatprep.subr.bf16.mxu0 0
    %110 = vmatpush1.bf16.msra.mxu0 %v90
    %111 = vmatprep.subr.bf16.mxu0 0
    %112 = vmatpush1.bf16.msra.mxu0 %v91
    %113 = vmatprep.subr.bf16.mxu0 0
    %114 = vmatpush1.bf16.msra.mxu0 %v92
    %115 = vmatprep.subr.bf16.mxu0 0
    %116 = vmatpush1.bf16.msra.mxu0 %v93
    %117 = vmatprep.subr.bf16.mxu0 0
    %118 = vmatpush1.bf16.msra.mxu0 %v94
    %119 = vmatprep.subr.bf16.mxu0 0
    %120 = vmatpush1.bf16.msra.mxu0 0
    %121 = vmatprep.subr.bf16.mxu0 0
    %122 = vmatpush1.bf16.msra.mxu0 0
    %123 = vmatprep.subr.bf16.mxu0 0
    %124 = vmatpush1.bf16.msra.mxu0 0
    %125 = vmatprep.subr.bf16.mxu0 0
    %126 = vmatpush1.bf16.msra.mxu0 0
    %127 = vmatprep.subr.bf16.mxu0 0
    %128 = vmatpush1.bf16.msra.mxu0 0
    %129 = vmatprep.subr.bf16.mxu0 0
    %130 = vmatpush1.bf16.msra.mxu0 0
    %131 = vmatprep.subr.bf16.mxu0 0
    %132 = vmatpush1.bf16.msra.mxu0 0
    %133 = vmatprep.subr.bf16.mxu0 0
    %134 = vmatpush1.bf16.msra.mxu0 0
    %135 = vmatprep.mubr.bf16.mxu0 0
    %136 = vmatmul.mubr.bf16.gmra.mrb[0].mxu0 %v31
    %v137 = vpop.f32.mrb[0].mxu0
    %v138 = vadd.f32 %v53, %v137
    %v139 = vpop.f32.mrb[0].mxu0
    %v140 = vpop.f32.mrb[0].mxu0
    %v141 = vpop.f32.mrb[0].mxu0
    %142 = vdwg.mxu0
    %143 = vst [vmem:[#allocation5] sm:$0xf] %v138
    // Predicated region
    $region18: #{tpu_custom_call.1} parent=1 // pred_check
      _
    $region19: #{tpu_custom_call.1} parent=1 // pred_check_branch
      %145 = sbr.rel (0) target = $region21
    $region20: #{tpu_custom_call.1} parent=1 // pred_region
      %s147 = ssub.s32 64, 64
      %148 = vsyncadd [#allocation4], %s147
      %s150 = sshll.u32 [#allocation5], 4
      %s151 = int_to_ptr.vmem [resolvable:$true] %s150
      %153 = dma.vmem_to_hbm [thread:$0]  %s151, 64, %s3, [#allocation4]
    $region21: #{tpu_custom_call.1} parent=1 // pred_fallthru
      _
    // Predicated region
    $region22: #{tpu_custom_call.1} parent=1 // pred_check
      _
    $region23: #{tpu_custom_call.1} parent=1 // pred_check_branch
      %155 = sbr.rel (0) target = $region25
    $region24: #{tpu_custom_call.1} parent=1 // pred_region
      %156 = dma.done [#allocation4], 64
    $region25: #{tpu_custom_call.1} parent=1 // pred_fallthru
      _
    %157 = vsyncpa [#allocation3], 1
    %158 = vsyncpa [#allocation4], 1

</llo_original>
